<compile_context>
chip_gen: v7x
topology: tpu7x:2x2x1
jax: 0.10.0
libtpu: 0.0.40
codegen_flags: <defaults>
</compile_context>

<pallas_src>
import jax
import jax.numpy as jnp
from jax.experimental import pallas as pl
from jax.experimental.pallas import tpu as pltpu


def _mu_kernel(mu_ref, o_ref):
    # Straight VMEM -> VMEM copy of the (1, 2) parameter block.
    o_ref[...] = mu_ref[...]


@jax.jit
def multivariate_mu_forward(x, mu):
    """Forward of MultivariateMu_personal.

    x:  any array (ignored, exactly like the PyTorch module).
    mu: (2,) float32 parameter.
    Returns mu, shape (2,), produced through the Pallas kernel.
    """
    del x  # The module's forward does not use x.

    n = mu.shape[0]
    mu_row = mu.reshape(1, n)  # 2-D full-array block; no padding/scatter.

    out_row = pl.pallas_call(
        _mu_kernel,
        out_shape=jax.ShapeDtypeStruct((1, n), mu.dtype),
        in_specs=[pl.BlockSpec(memory_space=pltpu.MemorySpace.VMEM)],
        out_specs=pl.BlockSpec(memory_space=pltpu.MemorySpace.VMEM),
        input_output_aliases={0: 0},
    )(mu_row)

    return out_row.reshape(n)


def init_params(key, dtype=jnp.float32):
    """Mirrors nn.Parameter(torch.randn(2))."""
    return {"mu": jax.random.normal(key, (2,), dtype=dtype)}


def reference_forward(x, mu):
    del x
    return mu


if __name__ == "__main__":
    # Small shapes consistent with the module: input_size only sizes x, which
    # the forward ignores; mu is always shape (2,).
    B, INPUT_SIZE = 2, 16

    key = jax.random.PRNGKey(0)
    kx, kmu = jax.random.split(key)
    x = jax.random.normal(kx, (B, INPUT_SIZE), dtype=jnp.float32)
    params = init_params(kmu)

    out = multivariate_mu_forward(x, params["mu"])
    out = jax.block_until_ready(out)

    ref = reference_forward(x, params["mu"])
    assert out.shape == (2,)
    assert out.dtype == jnp.float32
    assert jnp.allclose(out, ref), "mismatch vs reference"

    print("KERNEL_OK")
</pallas_src>

<mosaic_0001>
module attributes {stable_mosaic.version = 11 : i64} {
  func.func @_mu_kernel(%arg0: memref<1x2xf32, #tpu.memory_space<vmem>>, %arg1: memref<1x2xf32, #tpu.memory_space<vmem>>) attributes {dimension_semantics = [], scalar_prefetch = 0 : i64, scratch_operands = 0 : i64, tpu.core_type = #tpu.core_type<tc>} {
    %c0 = arith.constant 0 : index
    %c0_0 = arith.constant 0 : index
    %0 = vector.load %arg0[%c0, %c0_0] : memref<1x2xf32, #tpu.memory_space<vmem>>, vector<1x2xf32>
    %c0_1 = arith.constant 0 : index
    %c0_2 = arith.constant 0 : index
    %1 = vector.load %arg1[%c0_1, %c0_2] : memref<1x2xf32, #tpu.memory_space<vmem>>, vector<1x2xf32>
    tpu.vector_store %arg1[%c0_1, %c0_2], %0 {strides = array<i32>} : memref<1x2xf32, #tpu.memory_space<vmem>>, vector<1x2xf32>,
    return
  }
}

</mosaic_0001>

<llo_original>
// kernel: multivariate_mu_forward.1
$region0: #{multivariate_mu_forward.1}
  #allocation0 [shape = 'u32[]', space=smem, size = 0x4, offset = 0x4, fixed_abs, tag = 'smem constant byte address 0x4 - core index']
  #allocation1 [shape = 'u32[144,128]{1,0:T(1,128)}', space=vmem, size = 0x12000, scoped, tag = 'internal scratch']
  %s0 = inlined_call_operand.vmem [shape: f32[1,2], index: 0, kind: input, shape index: {}, may-alias: {0,1}]
  %s1 = inlined_call_operand.vmem [shape: f32[1,2], index: 1, kind: output, shape index: {}, may-alias: {0,1}]
  %s2 = sld [smem:[#allocation0]]
  $region14: #{multivariate_mu_forward.1} parent=0
    _
  %s4 = ssub.s32 1, %s2
  %s5 = scalar_select 0, %s4, %s2
  // Predicated region
  $region2: #{multivariate_mu_forward.1} parent=0 // pred_check
    _
  $region3: #{multivariate_mu_forward.1} parent=0 // pred_check_branch
    %7 = sbr.rel (0) target = $region5
  $region4: #{multivariate_mu_forward.1} parent=0 // pred_region
    _
  $region5: #{multivariate_mu_forward.1} parent=0 // pred_fallthru
    _
  %v8 = vld [vmem:[%s0] sm:$0x1]
  %vm9 = vcmask 8192
  %10 = vst.msk [vmem:[%s1] sm:$0x1] %vm9, %v8
  // Predicated region
  $region6: #{multivariate_mu_forward.1} parent=0 // pred_check
    _
  $region7: #{multivariate_mu_forward.1} parent=0 // pred_check_branch
    %12 = sbr.rel (0) target = $region9
  $region8: #{multivariate_mu_forward.1} parent=0 // pred_region
    _
  $region9: #{multivariate_mu_forward.1} parent=0 // pred_fallthru
    _
  // Predicated region
  $region10: #{multivariate_mu_forward.1} parent=0 // pred_check
    _
  $region11: #{multivariate_mu_forward.1} parent=0 // pred_check_branch
    %14 = sbr.rel (0) target = $region13
  $region12: #{multivariate_mu_forward.1} parent=0 // pred_region
    _
  $region13: #{multivariate_mu_forward.1} parent=0 // pred_fallthru
    _

</llo_original>
